<compile_context>
chip_gen: v7x
topology: tpu7x:2x2x1
jax: 0.10.0
libtpu: 0.0.40
codegen_flags: <defaults>
</compile_context>

<pallas_src>
import jax
import jax.numpy as jnp
from jax.experimental import pallas as pl
from jax.experimental.pallas import tpu as pltpu


def _lfa2_kernel(h_ref, m_ref, w2_ref, gh_ref, gm_ref, bv_ref, s_ref, o_ref):
    """Blocks: h/m/o = (TB, C, TN); w2 = (2C, C); gh/gm/bv = (C, 1); s = (1,1) SMEM."""
    c = gh_ref.shape[0]
    w2 = w2_ref[...]                      # (2C, C), compute dtype (bf16 default)
    gh = gh_ref[...]                      # (C, 1) f32 -- multiplies x_h
    gm = gm_ref[...]                      # (C, 1) f32 -- multiplies x_m
    bv = bv_ref[...]                      # (C, 1) f32 -- V bias
    s = s_ref[0, 0]                       # f32 scalar (bqᵀbk), from SMEM

    tb = h_ref.shape[0]
    for i in range(tb):                   # static, fully unrolled batch-row loop
        x_h = h_ref[i]                    # (C, TN)
        x_m = m_ref[i]                    # (C, TN)

        # Single fused matmul on x_m: rows [A ; Wv] -> [A@x_m ; Wv@x_m], f32 acc.
        t = jnp.dot(w2, x_m.astype(w2.dtype), preferred_element_type=jnp.float32)
        t_a = t[:c]                       # (C, TN) = (WqᵀWk) @ x_m
        v = t[c:] + bv                    # (C, TN) = V projection

        # Per-pixel gate: f32 elementwise + short sublane reduce over C.
        logit = jnp.sum(x_h * (t_a + gh) + gm * x_m, axis=0, keepdims=True) + s
        alpha = jax.nn.sigmoid(logit)     # (1, TN)

        o_ref[i] = (v * alpha).astype(o_ref.dtype)   # lane-dense store


def _pick_tiles(b, c, hw, itemsize, *, target_block_bytes, max_tile, max_tb=32):
    """Choose (TB pixel-rows per step, TN pixel tile, number of pixel tiles)."""
    # Pixel tile: whole row if it fits, else largest 128-multiple divisor <= cap.
    if hw <= max_tile:
        tn = hw
    else:
        cap = max_tile - (max_tile % 128)
        tn = 0
        t = cap
        while t >= 128:
            if hw % t == 0:
                tn = t
                break
            t -= 128
        if tn == 0:
            tn = cap                      # no exact divisor: tail block is masked
    num_pix = -(-hw // tn)

    # Batch rows per grid step: amortize ~0.35 µs/step overhead for small h*w,
    # but keep >= 2 total grid steps so both v7x TensorCores get work.
    row_bytes = c * tn * itemsize
    tb_target = max(1, target_block_bytes // max(row_bytes, 1))
    tb_target = min(tb_target, max_tb)
    if num_pix == 1 and b >= 2:
        tb_target = min(tb_target, b // 2)
    tb_target = max(1, min(int(tb_target), b))
    tb = 1
    for d in range(tb_target, 0, -1):     # largest divisor of b (no batch tail)
        if b % d == 0:
            tb = d
            break
    return tb, tn, num_pix


def _vmem_limit_bytes(block_bytes, c, tn):
    """Scoped-VMEM cap: double-buffered blocks + temporaries, clamped per chip."""
    try:
        cap = int(pltpu.get_tpu_info().vmem_capacity_bytes)
    except Exception:
        cap = 64 << 20                    # conservative (v7x per-TensorCore)
    need = 3 * 2 * block_bytes + 8 * c * tn * 4 + (8 << 20)
    return int(min(max(need, 32 << 20), (cap * 3) // 4))


def lfa2_pallas(H, M, params, *, compute_dtype=jnp.bfloat16,
                target_block_bytes=2 << 20, max_tile=16384):
    """H, M: (b, c, h, w).  Returns (b, c, h, w) with LFA2 forward semantics."""
    b, c, h, w = H.shape
    hw = h * w

    # NCHW -> (b, c, h*w): contiguous reshape, no HBM data movement.
    Hr = H.reshape(b, c, hw)
    Mr = M.reshape(b, c, hw)

    wq, bq = params["wq"], params["bq"]
    wk, bk = params["wk"], params["bk"]
    wv, bv = params["wv"], params["bv"]

    hi = jax.lax.Precision.HIGHEST
    # Host-side algebraic Q/K elimination (tiny matrices):
    #   q·k = x_hᵀ A x_m + gh·x_h + gm·x_m + s,    A = WqᵀWk
    A = jnp.matmul(wq.T, wk, precision=hi)                         # (c, c)
    gh = jnp.matmul(wq.T, bk, precision=hi).astype(jnp.float32)    # (c, 1)
    gm = jnp.matmul(wk.T, bq, precision=hi).astype(jnp.float32)    # (c, 1)
    s = jnp.matmul(bq.T, bk, precision=hi).reshape(1, 1).astype(jnp.float32)
    # Fuse gate matrix and V projection into one stationary (2c, c) weight.
    w2 = jnp.concatenate([A, wv], axis=0).astype(compute_dtype)    # (2c, c)

    itemsize = jnp.dtype(H.dtype).itemsize
    tb, tn, num_pix = _pick_tiles(b, c, hw, itemsize,
                                  target_block_bytes=target_block_bytes,
                                  max_tile=max_tile)
    grid = (b // tb, num_pix)
    block_bytes = tb * c * tn * itemsize

    row_spec = pl.BlockSpec((tb, c, tn), lambda bi, ti: (bi, 0, ti))
    w2_spec = pl.BlockSpec((2 * c, c), lambda bi, ti: (0, 0))
    col_spec = pl.BlockSpec((c, 1), lambda bi, ti: (0, 0))
    s_spec = pl.BlockSpec(memory_space=pltpu.MemorySpace.SMEM)

    out = pl.pallas_call(
        _lfa2_kernel,
        out_shape=jax.ShapeDtypeStruct((b, c, hw), H.dtype),
        grid_spec=pltpu.PrefetchScalarGridSpec(
            num_scalar_prefetch=0,
            grid=grid,
            in_specs=[row_spec, row_spec,
                      w2_spec, col_spec, col_spec, col_spec, s_spec],
            out_specs=row_spec,
        ),
        compiler_params=pltpu.CompilerParams(
            dimension_semantics=("parallel", "parallel"),
            vmem_limit_bytes=_vmem_limit_bytes(block_bytes, c, tn)),
    )(Hr, Mr, w2, gh, gm, bv.astype(jnp.float32), s)

    return out.reshape(b, c, h, w)


def init_params(key, c):
    """Deterministic init matching Conv2d(c, c, 1) shapes (weight kept as (C_out, C_in))."""
    keys = jax.random.split(key, 6)
    bound = 1.0 / jnp.sqrt(c)  # fan_in = c * 1 * 1
    def u(k, shape):
        return jax.random.uniform(k, shape, jnp.float32, -bound, bound)
    return {
        "wq": u(keys[0], (c, c)), "bq": u(keys[1], (c, 1)),
        "wk": u(keys[2], (c, c)), "bk": u(keys[3], (c, 1)),
        "wv": u(keys[4], (c, c)), "bv": u(keys[5], (c, 1)),
    }


def lfa2_reference(H, M, params):
    """Pure-JAX reference reproducing the PyTorch forward exactly."""
    Hc = jnp.transpose(H, (0, 2, 3, 1))  # (b,h,w,c)
    Mc = jnp.transpose(M, (0, 2, 3, 1))
    Q = Hc @ params["wq"].T + params["bq"][:, 0]
    K = Mc @ params["wk"].T + params["bk"][:, 0]
    V = Mc @ params["wv"].T + params["bv"][:, 0]
    alpha = jax.nn.sigmoid(jnp.sum(Q * K, axis=-1, keepdims=True))
    res = V * alpha
    return jnp.transpose(res, (0, 3, 1, 2))


if __name__ == "__main__":
    b, c, h, w = 2, 32, 16, 16   # hidden_channel = 32
    key = jax.random.PRNGKey(0)
    k_h, k_m, k_p = jax.random.split(key, 3)
    H = jax.random.normal(k_h, (b, c, h, w), jnp.float32)
    M = jax.random.normal(k_m, (b, c, h, w), jnp.float32)
    params = init_params(k_p, c)

    ref = lfa2_reference(H, M, params)

    # f32 MXU-operand path: tight check against the PyTorch-equivalent reference.
    out_f32 = jax.block_until_ready(
        lfa2_pallas(H, M, params, compute_dtype=jnp.float32))
    assert out_f32.shape == (b, c, h, w)
    err32 = jnp.max(jnp.abs(out_f32 - ref))
    assert jnp.allclose(out_f32, ref, atol=1e-4, rtol=1e-4), f"f32 max err {err32}"

    # Default bf16-operand path (f32 accumulation): looser tolerance.
    out = jax.block_until_ready(lfa2_pallas(H, M, params))
    errbf = jnp.max(jnp.abs(out - ref))
    assert jnp.allclose(out, ref, atol=5e-2, rtol=5e-2), f"bf16 max err {errbf}"

    print("KERNEL_OK")
</pallas_src>

<mosaic_0001>
module attributes {stable_mosaic.version = 11 : i64} {
  func.func @_lfa2_kernel(%arg0: i32, %arg1: i32, %arg2: memref<1x32x256xf32, #tpu.memory_space<vmem>>, %arg3: memref<1x32x256xf32, #tpu.memory_space<vmem>>, %arg4: memref<64x32xf32, #tpu.memory_space<vmem>>, %arg5: memref<32x1xf32, #tpu.memory_space<vmem>>, %arg6: memref<32x1xf32, #tpu.memory_space<vmem>>, %arg7: memref<32x1xf32, #tpu.memory_space<vmem>>, %arg8: memref<1x1xf32, #tpu.memory_space<smem>>, %arg9: memref<1x32x256xf32, #tpu.memory_space<vmem>>) attributes {dimension_semantics = [#tpu.dimension_semantics<parallel>, #tpu.dimension_semantics<parallel>], iteration_bounds = array<i64: 2, 1>, scalar_prefetch = 0 : i64, scratch_operands = 0 : i64, tpu.core_type = #tpu.core_type<tc>, window_params = [{transform_indices = @transform_0, window_bounds = array<i64: 1, 32, 256>}, {transform_indices = @transform_1, window_bounds = array<i64: 1, 32, 256>}, {pipeline_mode = #tpu.pipeline_mode<synchronous>, transform_indices = @transform_2, window_bounds = array<i64: 64, 32>}, {pipeline_mode = #tpu.pipeline_mode<synchronous>, transform_indices = @transform_3, window_bounds = array<i64: 32, 1>}, {pipeline_mode = #tpu.pipeline_mode<synchronous>, transform_indices = @transform_4, window_bounds = array<i64: 32, 1>}, {pipeline_mode = #tpu.pipeline_mode<synchronous>, transform_indices = @transform_5, window_bounds = array<i64: 32, 1>}, {transform_indices = @transform_6, window_bounds = array<i64: 1, 1>}, {transform_indices = @transform_7, window_bounds = array<i64: 1, 32, 256>}]} {
    %c0 = arith.constant 0 : index
    %c0_0 = arith.constant 0 : index
    %0 = vector.load %arg4[%c0, %c0_0] : memref<64x32xf32, #tpu.memory_space<vmem>>, vector<64x32xf32>
    %c0_1 = arith.constant 0 : index
    %c0_2 = arith.constant 0 : index
    %1 = vector.load %arg5[%c0_1, %c0_2] : memref<32x1xf32, #tpu.memory_space<vmem>>, vector<32x1xf32>
    %c0_3 = arith.constant 0 : index
    %c0_4 = arith.constant 0 : index
    %2 = vector.load %arg6[%c0_3, %c0_4] : memref<32x1xf32, #tpu.memory_space<vmem>>, vector<32x1xf32>
    %c0_5 = arith.constant 0 : index
    %c0_6 = arith.constant 0 : index
    %3 = vector.load %arg7[%c0_5, %c0_6] : memref<32x1xf32, #tpu.memory_space<vmem>>, vector<32x1xf32>
    %c0_7 = arith.constant 0 : index
    %c0_8 = arith.constant 0 : index
    %4 = memref.load %arg8[%c0_7, %c0_8] : memref<1x1xf32, #tpu.memory_space<smem>>
    %c0_9 = arith.constant 0 : index
    %c0_10 = arith.constant 0 : index
    %c0_11 = arith.constant 0 : index
    %5 = vector.load %arg2[%c0_9, %c0_10, %c0_11] : memref<1x32x256xf32, #tpu.memory_space<vmem>>, vector<1x32x256xf32>
    %6 = vector.shape_cast %5 : vector<1x32x256xf32> to vector<32x256xf32>
    %c0_12 = arith.constant 0 : index
    %c0_13 = arith.constant 0 : index
    %c0_14 = arith.constant 0 : index
    %7 = vector.load %arg3[%c0_12, %c0_13, %c0_14] : memref<1x32x256xf32, #tpu.memory_space<vmem>>, vector<1x32x256xf32>
    %8 = vector.shape_cast %7 : vector<1x32x256xf32> to vector<32x256xf32>
    %cst = arith.constant dense<0.000000e+00> : vector<64x256xf32>
    %9 = tpu.matmul %0, %8, %cst {dimension_numbers = #tpu.dot_dimension_numbers<[1], [0], [0], [1], [0, 0, 1, 1], [], []>} : vector<64x32xf32>, vector<32x256xf32>, vector<64x256xf32> -> vector<64x256xf32>
    %10 = vector.extract_strided_slice %9 {offsets = [0, 0], sizes = [32, 256], strides = [1, 1]} : vector<64x256xf32> to vector<32x256xf32>
    %11 = vector.extract_strided_slice %9 {offsets = [32, 0], sizes = [32, 256], strides = [1, 1]} : vector<64x256xf32> to vector<32x256xf32>
    %12 = vector.broadcast %3 : vector<32x1xf32> to vector<32x256xf32>
    %13 = arith.addf %11, %12 : vector<32x256xf32>
    %14 = vector.broadcast %1 : vector<32x1xf32> to vector<32x256xf32>
    %15 = arith.addf %10, %14 : vector<32x256xf32>
    %16 = arith.mulf %6, %15 : vector<32x256xf32>
    %17 = vector.broadcast %2 : vector<32x1xf32> to vector<32x256xf32>
    %18 = arith.mulf %17, %8 : vector<32x256xf32>
    %19 = arith.addf %16, %18 : vector<32x256xf32>
    %cst_15 = arith.constant dense<0.000000e+00> : vector<256xf32>
    %20 = vector.multi_reduction <add>, %19, %cst_15 [0] : vector<32x256xf32> to vector<256xf32>
    %21 = vector.shape_cast %20 : vector<256xf32> to vector<1x256xf32>
    %22 = vector.broadcast %4 : f32 to vector<1x256xf32>
    %23 = arith.addf %21, %22 : vector<1x256xf32>
    %24 = arith.negf %23 : vector<1x256xf32>
    %25 = math.exp %24 : vector<1x256xf32>
    %cst_16 = arith.constant 1.000000e+00 : f32
    %26 = vector.broadcast %cst_16 : f32 to vector<1x256xf32>
    %27 = arith.addf %26, %25 : vector<1x256xf32>
    %28 = arith.divf %26, %27 : vector<1x256xf32>
    %29 = vector.broadcast %28 : vector<1x256xf32> to vector<32x256xf32>
    %30 = arith.mulf %13, %29 : vector<32x256xf32>
    %c0_17 = arith.constant 0 : index
    %c0_18 = arith.constant 0 : index
    %c0_19 = arith.constant 0 : index
    %31 = vector.load %arg9[%c0_17, %c0_18, %c0_19] : memref<1x32x256xf32, #tpu.memory_space<vmem>>, vector<1x32x256xf32>
    %32 = vector.shape_cast %31 : vector<1x32x256xf32> to vector<32x256xf32>
    %33 = vector.shape_cast %30 : vector<32x256xf32> to vector<1x32x256xf32>
    tpu.vector_store %arg9[%c0_17, %c0_18, %c0_19], %33 {strides = array<i32>} : memref<1x32x256xf32, #tpu.memory_space<vmem>>, vector<1x32x256xf32>,
    return
  }
  func.func @transform_0(%arg0: i32, %arg1: i32) -> (i32, i32, i32) {
    %c0_i32 = arith.constant 0 : i32
    %c0_i32_0 = arith.constant 0 : i32
    return %arg0, %c0_i32, %arg1 : i32, i32, i32
  }
  func.func @transform_1(%arg0: i32, %arg1: i32) -> (i32, i32, i32) {
    %c0_i32 = arith.constant 0 : i32
    %c0_i32_0 = arith.constant 0 : i32
    return %arg0, %c0_i32, %arg1 : i32, i32, i32
  }
  func.func @transform_2(%arg0: i32, %arg1: i32) -> (i32, i32) {
    %c0_i32 = arith.constant 0 : i32
    %c0_i32_0 = arith.constant 0 : i32
    %c0_i32_1 = arith.constant 0 : i32
    return %c0_i32, %c0_i32_0 : i32, i32
  }
  func.func @transform_3(%arg0: i32, %arg1: i32) -> (i32, i32) {
    %c0_i32 = arith.constant 0 : i32
    %c0_i32_0 = arith.constant 0 : i32
    %c0_i32_1 = arith.constant 0 : i32
    return %c0_i32, %c0_i32_0 : i32, i32
  }
  func.func @transform_4(%arg0: i32, %arg1: i32) -> (i32, i32) {
    %c0_i32 = arith.constant 0 : i32
    %c0_i32_0 = arith.constant 0 : i32
    %c0_i32_1 = arith.constant 0 : i32
    return %c0_i32, %c0_i32_0 : i32, i32
  }
  func.func @transform_5(%arg0: i32, %arg1: i32) -> (i32, i32) {
    %c0_i32 = arith.constant 0 : i32
    %c0_i32_0 = arith.constant 0 : i32
    %c0_i32_1 = arith.constant 0 : i32
    return %c0_i32, %c0_i32_0 : i32, i32
  }
  func.func @transform_6(%arg0: i32, %arg1: i32) -> (i32, i32) {
    %c0_i32 = arith.constant 0 : i32
    %c0_i32_0 = arith.constant 0 : i32
    %c0_i32_1 = arith.constant 0 : i32
    return %c0_i32, %c0_i32_0 : i32, i32
  }
  func.func @transform_7(%arg0: i32, %arg1: i32) -> (i32, i32, i32) {
    %c0_i32 = arith.constant 0 : i32
    %c0_i32_0 = arith.constant 0 : i32
    return %arg0, %c0_i32, %arg1 : i32, i32, i32
  }
}

</mosaic_0001>

<llo_original>
// kernel: tpu_custom_call.1
$region0: #{tpu_custom_call.1}
  #allocation0 [shape = 'u32[]', space=smem, size = 0x4, offset = 0x4, fixed_abs, tag = 'smem constant byte address 0x4 - core index']
  #allocation1 [shape = 'u32[144,128]{1,0:T(1,128)}', space=vmem, size = 0x12000, scoped, tag = 'internal scratch']
  #allocation2 [shape = 'f32[1,1]{1,0:T(1,128)S(6)}', space=smem, size = 0x200, scoped, tag = 'scoped memory for tpu_custom_call.1']
  %s0 = inlined_call_operand.vmem [shape: f32[2,32,256], index: 0, kind: input, shape index: {}]
  %s1 = inlined_call_operand.hbm [shape: f32[2,32,256], index: 1, kind: input, shape index: {}]
  %s2 = inlined_call_operand.vmem [shape: f32[64,32], index: 2, kind: input, shape index: {}]
  %s3 = inlined_call_operand.vmem [shape: f32[32,1], index: 3, kind: input, shape index: {}]
  %s4 = inlined_call_operand.vmem [shape: f32[32,1], index: 4, kind: input, shape index: {}]
  %s5 = inlined_call_operand.vmem [shape: f32[32,1], index: 5, kind: input, shape index: {}]
  %s6 = inlined_call_operand.<no memory space> [shape: f32[1,1], index: 6, kind: input, shape index: {}]
  %s7 = inlined_call_operand.hbm [shape: f32[2,32,256], index: 7, kind: output, shape index: {}]
  %s8 = sld [smem:[#allocation0]]
  $region65: #{tpu_custom_call.1} parent=0
    _
  %s10 = ssub.s32 1, %s8
  %s11 = scalar_select 0, %s10, %s8
  %12 = sst [smem:[#allocation2]] %s6
  $region1: #{tpu_custom_call.1} parent=0
    #allocation3 [shape = 'u8[65536]{0}', space=vmem, size = 0x10000, scoped, tag = 'input window, operand 1']
    #allocation4 [shape = 's32[2]{0}', space=sflag, size = 0x8, scoped, tag = 'scoped memory for tpu_custom_call.1']
    #allocation5 [shape = 's32[2]{0}', space=sflag, size = 0x8, scoped, tag = 'scoped memory for tpu_custom_call.1']
    #allocation6 [shape = 'u8[65536]{0}', space=vmem, size = 0x10000, scoped, tag = 'output window, operand 0']
    %13 = vsyncpa [#allocation4], 0
    %s14 = scalar_lea.sflag [#allocation4], 1
    %15 = vsyncpa %s14, 0
    %16 = vsyncpa [#allocation5], 0
    %s17 = scalar_lea.sflag [#allocation5], 1
    %18 = vsyncpa %s17, 0
    loop: start=0, step=1, limit=4
    $region2: #{tpu_custom_call.1} parent=1 // loop_pre_header
      _
    $region3: #{tpu_custom_call.1} parent=1 // loop_header
      %s20 = sphi 0, %s24
      %p21 = scmp.ge.s32.totalorder %s20, 4
      %s27 = sphi 0, %s39
      %s28 = sphi 0, %s35
      %s29 = sphi 0, %s27
      %s30 = sphi 0, %s28
      %s31 = sphi 0, %s29
      %s32 = sphi 0, %s30
      %s44 = sphi 0, %s46
      %s47 = sphi 0, %s44
      %s48 = sphi 0, %s47
      %s64 = sphi 0, %s48
      %s72 = sphi 0, %s74
      %s75 = sphi 0, %s72
      %s76 = sphi 0, %s75
      %s92 = sphi 0, %s76
      %s96 = sphi 0, %s96
      %s98 = sphi 0, %s96
      %s99 = sphi 0, %s98
      %s113 = sphi 0, %s99
      %s117 = sphi 0, %s117
      %s119 = sphi 0, %s117
      %s120 = sphi 0, %s119
      %s134 = sphi 0, %s120
      %s138 = sphi 0, %s138
      %s140 = sphi 0, %s138
      %s141 = sphi 0, %s140
      %s155 = sphi 0, %s141
      %s159 = sphi 0, %s159
      %s161 = sphi 0, %s159
      %s162 = sphi 0, %s161
      %s176 = sphi 0, %s162
      %s180 = sphi 0, %s180
      %s182 = sphi 0, %s180
      %s183 = sphi 0, %s182
      %s197 = sphi 0, %s183
      %s205 = sphi 0, %s207
      %s208 = sphi 0, %s205
      %s209 = sphi 0, %s208
      %s225 = sphi 0, %s209
    $region4: #{tpu_custom_call.1} parent=1 // loop_header_branch
      %23 = sbr.rel (%p21) target = $region8
    $region5: #{tpu_custom_call.1} parent=1 // loop_body
      %s25 = ssub.s32 %s20, 1
      %s26 = ssub.s32 %s20, 2
      %s33 = sadd.s32 1, %s28
      %p34 = scmp.ge.s32.totalorder %s33, 1
      %s35 = scalar_select %p34, 0, %s33
      %s36 = sadd.s32 1, %s27
      %s37 = scalar_select %p34, %s36, %s27
      %p38 = scmp.ge.s32.totalorder %s37, 2
      %s39 = scalar_select %p38, 0, %s37
      %s40 = ssub.s32 %s27, %s39
      %s41 = ssub.s32 %s28, %s35
      %s42 = sor.u32 %s40, %s41
      %p43 = scmp.eq.s32.totalorder %s42, 0
      %s45 = sadd.s32 %s44, 1
      %s46 = scalar_select %p43, %s44, %s45
      %p49 = pneg %p43
      %p50 = scmp.eq.s32.totalorder %s20, 1
      %p51 = por %p49, %p50
      %p52 = scmp.ne.s32.totalorder %s44, %s47
      %p53 = scmp.eq.s32.totalorder %s20, 0
      %p54 = por %p52, %p53
      %p55 = scmp.ne.s32.totalorder %s44, %s47
      %p56 = scmp.eq.s32.totalorder %s25, 1
      %p57 = por %p55, %p56
      %p58 = scmp.ne.s32.totalorder %s47, %s48
      %p59 = scmp.eq.s32.totalorder %s25, 0
      %p60 = por %p58, %p59
      %p61 = scmp.ne.s32.totalorder %s47, %s48
      %p62 = scmp.eq.s32.totalorder %s26, 1
      %p63 = por %p61, %p62
      %p65 = scmp.ne.s32.totalorder %s48, %s64
      %p66 = scmp.eq.s32.totalorder %s26, 0
      %p67 = por %p65, %p66
      %s68 = ssub.s32 %s27, %s39
      %s69 = ssub.s32 %s28, %s35
      %s70 = sor.u32 %s68, %s69
      %p71 = scmp.eq.s32.totalorder %s70, 0
      %s73 = sadd.s32 %s72, 1
      %s74 = scalar_select %p71, %s72, %s73
      %p77 = pneg %p71
      %p78 = scmp.eq.s32.totalorder %s20, 1
      %p79 = por %p77, %p78
      %p80 = scmp.ne.s32.totalorder %s72, %s75
      %p81 = scmp.eq.s32.totalorder %s20, 0
      %p82 = por %p80, %p81
      %p83 = scmp.ne.s32.totalorder %s72, %s75
      %p84 = scmp.eq.s32.totalorder %s25, 1
      %p85 = por %p83, %p84
      %p86 = scmp.ne.s32.totalorder %s75, %s76
      %p87 = scmp.eq.s32.totalorder %s25, 0
      %p88 = por %p86, %p87
      %p89 = scmp.ne.s32.totalorder %s75, %s76
      %p90 = scmp.eq.s32.totalorder %s26, 1
      %p91 = por %p89, %p90
      %p93 = scmp.ne.s32.totalorder %s76, %s92
      %p94 = scmp.eq.s32.totalorder %s26, 0
      %p95 = por %p93, %p94
      %s97 = sadd.s32 %s96, 1
      %p100 = scmp.eq.s32.totalorder %s20, 1
      %p101 = scmp.ne.s32.totalorder %s96, %s98
      %p102 = scmp.eq.s32.totalorder %s20, 0
      %p103 = por %p101, %p102
      %p104 = scmp.ne.s32.totalorder %s96, %s98
      %p105 = scmp.eq.s32.totalorder %s25, 1
      %p106 = por %p104, %p105
      %p107 = scmp.ne.s32.totalorder %s98, %s99
      %p108 = scmp.eq.s32.totalorder %s25, 0
      %p109 = por %p107, %p108
      %p110 = scmp.ne.s32.totalorder %s98, %s99
      %p111 = scmp.eq.s32.totalorder %s26, 1
      %p112 = por %p110, %p111
      %p114 = scmp.ne.s32.totalorder %s99, %s113
      %p115 = scmp.eq.s32.totalorder %s26, 0
      %p116 = por %p114, %p115
      %s118 = sadd.s32 %s117, 1
      %p121 = scmp.eq.s32.totalorder %s20, 1
      %p122 = scmp.ne.s32.totalorder %s117, %s119
      %p123 = scmp.eq.s32.totalorder %s20, 0
      %p124 = por %p122, %p123
      %p125 = scmp.ne.s32.totalorder %s117, %s119
      %p126 = scmp.eq.s32.totalorder %s25, 1
      %p127 = por %p125, %p126
      %p128 = scmp.ne.s32.totalorder %s119, %s120
      %p129 = scmp.eq.s32.totalorder %s25, 0
      %p130 = por %p128, %p129
      %p131 = scmp.ne.s32.totalorder %s119, %s120
      %p132 = scmp.eq.s32.totalorder %s26, 1
      %p133 = por %p131, %p132
      %p135 = scmp.ne.s32.totalorder %s120, %s134
      %p136 = scmp.eq.s32.totalorder %s26, 0
      %p137 = por %p135, %p136
      %s139 = sadd.s32 %s138, 1
      %p142 = scmp.eq.s32.totalorder %s20, 1
      %p143 = scmp.ne.s32.totalorder %s138, %s140
      %p144 = scmp.eq.s32.totalorder %s20, 0
      %p145 = por %p143, %p144
      %p146 = scmp.ne.s32.totalorder %s138, %s140
      %p147 = scmp.eq.s32.totalorder %s25, 1
      %p148 = por %p146, %p147
      %p149 = scmp.ne.s32.totalorder %s140, %s141
      %p150 = scmp.eq.s32.totalorder %s25, 0
      %p151 = por %p149, %p150
      %p152 = scmp.ne.s32.totalorder %s140, %s141
      %p153 = scmp.eq.s32.totalorder %s26, 1
      %p154 = por %p152, %p153
      %p156 = scmp.ne.s32.totalorder %s141, %s155
      %p157 = scmp.eq.s32.totalorder %s26, 0
      %p158 = por %p156, %p157
      %s160 = sadd.s32 %s159, 1
      %p163 = scmp.eq.s32.totalorder %s20, 1
      %p164 = scmp.ne.s32.totalorder %s159, %s161
      %p165 = scmp.eq.s32.totalorder %s20, 0
      %p166 = por %p164, %p165
      %p167 = scmp.ne.s32.totalorder %s159, %s161
      %p168 = scmp.eq.s32.totalorder %s25, 1
      %p169 = por %p167, %p168
      %p170 = scmp.ne.s32.totalorder %s161, %s162
      %p171 = scmp.eq.s32.totalorder %s25, 0
      %p172 = por %p170, %p171
      %p173 = scmp.ne.s32.totalorder %s161, %s162
      %p174 = scmp.eq.s32.totalorder %s26, 1
      %p175 = por %p173, %p174
      %p177 = scmp.ne.s32.totalorder %s162, %s176
      %p178 = scmp.eq.s32.totalorder %s26, 0
      %p179 = por %p177, %p178
      %s181 = sadd.s32 %s180, 1
      %p184 = scmp.eq.s32.totalorder %s20, 1
      %p185 = scmp.ne.s32.totalorder %s180, %s182
      %p186 = scmp.eq.s32.totalorder %s20, 0
      %p187 = por %p185, %p186
      %p188 = scmp.ne.s32.totalorder %s180, %s182
      %p189 = scmp.eq.s32.totalorder %s25, 1
      %p190 = por %p188, %p189
      %p191 = scmp.ne.s32.totalorder %s182, %s183
      %p192 = scmp.eq.s32.totalorder %s25, 0
      %p193 = por %p191, %p192
      %p194 = scmp.ne.s32.totalorder %s182, %s183
      %p195 = scmp.eq.s32.totalorder %s26, 1
      %p196 = por %p194, %p195
      %p198 = scmp.ne.s32.totalorder %s183, %s197
      %p199 = scmp.eq.s32.totalorder %s26, 0
      %p200 = por %p198, %p199
      %s201 = ssub.s32 %s27, %s39
      %s202 = ssub.s32 %s28, %s35
      %s203 = sor.u32 %s201, %s202
      %p204 = scmp.eq.s32.totalorder %s203, 0
      %s206 = sadd.s32 %s205, 1
      %s207 = scalar_select %p204, %s205, %s206
      %p210 = pneg %p204
      %p211 = scmp.eq.s32.totalorder %s20, 1
      %p212 = por %p210, %p211
      %p213 = scmp.ne.s32.totalorder %s205, %s208
      %p214 = scmp.eq.s32.totalorder %s20, 0
      %p215 = por %p213, %p214
      %p216 = scmp.ne.s32.totalorder %s205, %s208
      %p217 = scmp.eq.s32.totalorder %s25, 1
      %p218 = por %p216, %p217
      %p219 = scmp.ne.s32.totalorder %s208, %s209
      %p220 = scmp.eq.s32.totalorder %s25, 0
      %p221 = por %p219, %p220
      %p222 = scmp.ne.s32.totalorder %s208, %s209
      %p223 = scmp.eq.s32.totalorder %s26, 1
      %p224 = por %p222, %p223
      %p226 = scmp.ne.s32.totalorder %s209, %s225
      %p227 = scmp.eq.s32.totalorder %s26, 0
      %p228 = por %p226, %p227
      %p229 = scmp.le.s32.totalorder 1, %s20
      %p230 = scmp.lt.s32.totalorder %s20, 3
      %p231 = pnand %p229, %p230
      %p232 = pneg %p231
      // Predicated region
      $region9: #{tpu_custom_call.1} parent=5 // pred_check
        _
      $region10: #{tpu_custom_call.1} parent=5 // pred_check_branch
        %234 = sbr.rel (%p231) target = $region12
      $region11: #{tpu_custom_call.1} parent=5 // pred_region
        %s235 = ssub.s32 %s20, 1
        // Predicated region
        $region13: #{tpu_custom_call.1} parent=11 // pred_check
          %p236 = pneg %p109
        $region14: #{tpu_custom_call.1} parent=11 // pred_check_branch
          %238 = sbr.rel (%p236) target = $region16
        $region15: #{tpu_custom_call.1} parent=11 // pred_region
          _
        $region16: #{tpu_custom_call.1} parent=11 // pred_fallthru
          _
        // Predicated region
        $region17: #{tpu_custom_call.1} parent=11 // pred_check
          %p239 = pneg %p130
        $region18: #{tpu_custom_call.1} parent=11 // pred_check_branch
          %241 = sbr.rel (%p239) target = $region20
        $region19: #{tpu_custom_call.1} parent=11 // pred_region
          _
        $region20: #{tpu_custom_call.1} parent=11 // pred_fallthru
          _
        // Predicated region
        $region21: #{tpu_custom_call.1} parent=11 // pred_check
          %p242 = pneg %p151
        $region22: #{tpu_custom_call.1} parent=11 // pred_check_branch
          %244 = sbr.rel (%p242) target = $region24
        $region23: #{tpu_custom_call.1} parent=11 // pred_region
          _
        $region24: #{tpu_custom_call.1} parent=11 // pred_fallthru
          _
        // Predicated region
        $region25: #{tpu_custom_call.1} parent=11 // pred_check
          %p245 = pneg %p172
        $region26: #{tpu_custom_call.1} parent=11 // pred_check_branch
          %247 = sbr.rel (%p245) target = $region28
        $region27: #{tpu_custom_call.1} parent=11 // pred_region
          _
        $region28: #{tpu_custom_call.1} parent=11 // pred_fallthru
          _
        // Predicated region
        $region29: #{tpu_custom_call.1} parent=11 // pred_check
          %p248 = pneg %p193
        $region30: #{tpu_custom_call.1} parent=11 // pred_check_branch
          %250 = sbr.rel (%p248) target = $region32
        $region31: #{tpu_custom_call.1} parent=11 // pred_region
          _
        $region32: #{tpu_custom_call.1} parent=11 // pred_fallthru
          _
      $region12: #{tpu_custom_call.1} parent=5 // pred_fallthru
        _
      %p251 = scmp.lt.s32.totalorder %s20, 2
      // Predicated region
      $region33: #{tpu_custom_call.1} parent=5 // pred_check
        %p252 = pneg %p251
      $region34: #{tpu_custom_call.1} parent=5 // pred_check_branch
        %254 = sbr.rel (%p252) target = $region36
      $region35: #{tpu_custom_call.1} parent=5 // pred_region
        // Predicated region
        $region37: #{tpu_custom_call.1} parent=35 // pred_check
          %p255 = pneg %p54
        $region38: #{tpu_custom_call.1} parent=35 // pred_check_branch
          %257 = sbr.rel (%p255) target = $region40
        $region39: #{tpu_custom_call.1} parent=35 // pred_region
          %s258 = smul.u32 2, %s28
          %p259 = scmp.lt.s32.totalorder %s27, 1
          %s260 = scalar_select %p259, %s27, 1
          %p261 = scmp.lt.s32.totalorder %s258, 1
          %s262 = scalar_select %p261, %s258, 1
          %s263 = smul.addr %s260, 8
          %s264 = sadd.s32 %s262, %s263
          %s265 = smul.addr %s264, 8
          %s266 = scalar_lea.vmem %s0, %s265
          %s267 = smul.u32 2, %s28
        $region40: #{tpu_custom_call.1} parent=35 // pred_fallthru
          _
        // Predicated region
        $region41: #{tpu_custom_call.1} parent=35 // pred_check
          %p268 = pneg %p82
        $region42: #{tpu_custom_call.1} parent=35 // pred_check_branch
          %270 = sbr.rel (%p268) target = $region44
        $region43: #{tpu_custom_call.1} parent=35 // pred_region
          %s271 = sand.u32 %s72, 1
          %s272 = scalar_lea.sflag [#allocation4], %s271
          %s273 = sand.u32 %s72, 1
          %s274 = smul.addr %s273, 64
          %s275 = scalar_lea.vmem [#allocation3], %s274
          %s276 = smul.u32 2, %s28
          %s278 = ssub.s32 1024, 1024
          %279 = vsyncadd %s272, %s278
          %s280 = smul.addr %s27, 8
          %s281 = sadd.s32 %s276, %s280
          %s282 = smul.addr %s281, 128
          %s283 = scalar_lea.hbm %s1, %s282
          %s284 = sshll.u32 %s275, 4
          %s285 = int_to_ptr.vmem [resolvable:$true] %s284
          %290 = dma.hbm_to_vmem [thread:$0]  %s283, 1024, %s285, %s272, 256, 256, 16
        $region44: #{tpu_custom_call.1} parent=35 // pred_fallthru
          _
      $region36: #{tpu_custom_call.1} parent=5 // pred_fallthru
        _
      %p291 = scmp.le.s32.totalorder 1, %s20
      %p292 = scmp.lt.s32.totalorder %s20, 3
      %p293 = pnand %p291, %p292
      %p294 = pneg %p293
      // Predicated region
      $region45: #{tpu_custom_call.1} parent=5 // pred_check
        _
      $region46: #{tpu_custom_call.1} parent=5 // pred_check_branch
        %296 = sbr.rel (%p293) target = $region48
      $region47: #{tpu_custom_call.1} parent=5 // pred_region
        %s297 = ssub.s32 %s20, 1
        %s298 = sand.u32 %s75, 1
        %s299 = scalar_lea.sflag [#allocation4], %s298
        %s300 = sand.u32 %s75, 1
        %s301 = smul.addr %s300, 64
        %s302 = scalar_lea.vmem [#allocation3], %s301
        // Predicated region
        $region49: #{tpu_custom_call.1} parent=47 // pred_check
          %p303 = pneg %p88
        $region50: #{tpu_custom_call.1} parent=47 // pred_check_branch
          %305 = sbr.rel (%p303) target = $region52
        $region51: #{tpu_custom_call.1} parent=47 // pred_region
          %306 = dma.done %s299, 1024
        $region52: #{tpu_custom_call.1} parent=47 // pred_fallthru
          _
        %s307 = smul.u32 2, %s30
        %p308 = scmp.lt.s32.totalorder %s29, 1
        %s309 = scalar_select %p308, %s29, 1
        %p310 = scmp.lt.s32.totalorder %s307, 1
        %s311 = scalar_select %p310, %s307, 1
        %s312 = smul.addr %s309, 8
        %s313 = sadd.s32 %s311, %s312
        %s314 = smul.addr %s313, 8
        %s315 = scalar_lea.vmem %s0, %s314
        %p316 = pneg %p60
        %p317 = pneg %p57
        %s318 = sand.u32 %s75, 1
        %s319 = scalar_lea.sflag [#allocation4], %s318
        %s320 = sand.u32 %s75, 1
        %s321 = smul.addr %s320, 64
        %s322 = scalar_lea.vmem [#allocation3], %s321
        %p323 = pneg %p88
        %p324 = pneg %p85
        %p325 = pneg %p109
        %p326 = pneg %p106
        %p327 = pneg %p130
        %p328 = pneg %p127
        %p329 = pneg %p151
        %p330 = pneg %p148
        %p331 = pneg %p172
        %p332 = pneg %p169
        %p333 = pneg %p193
        %p334 = pneg %p190
        %p335 = pneg %p221
        %p336 = pneg %p218
        %s337 = sand.u32 %s208, 1
        %s338 = scalar_lea.sflag [#allocation5], %s337
        %s339 = sand.u32 %s208, 1
        %s340 = smul.addr %s339, 64
        %s341 = scalar_lea.vmem [#allocation6], %s340
        %s342 = smul.u32 2, %s30
        %p343 = scmp.lt.s32.totalorder %s29, 1
        %s344 = scalar_select %p343, %s29, 1
        %p345 = scmp.lt.s32.totalorder %s342, 1
        %s346 = scalar_select %p345, %s342, 1
        %s347 = smul.addr %s344, 8
        %s348 = sadd.s32 %s346, %s347
        %s349 = smul.addr %s348, 8
        %s350 = scalar_lea.vmem %s0, %s349
        %s351 = smul.u32 2, %s30
        %s352 = smul.u32 2, %s30
        %s353 = smul.u32 2, %s30
        %v354 = vld [vmem:[%s2] sm:$0xff]
        %v355 = vld [vmem:[%s2 + $0x8] sm:$0xff]
        %v356 = vld [vmem:[%s2 + $0x10] sm:$0xff]
        %v357 = vld [vmem:[%s2 + $0x18] sm:$0xff]
        %v358 = vld [vmem:[%s2 + $0x20] sm:$0xff]
        %v359 = vld [vmem:[%s2 + $0x28] sm:$0xff]
        %v360 = vld [vmem:[%s2 + $0x30] sm:$0xff]
        %v361 = vld [vmem:[%s2 + $0x38] sm:$0xff]
        %v362 = vld [vmem:[%s3] sm:$0xff]
        %v363 = vld [vmem:[%s3 + $0x8] sm:$0xff]
        %v364 = vld [vmem:[%s3 + $0x10] sm:$0xff]
        %v365 = vld [vmem:[%s3 + $0x18] sm:$0xff]
        %v366 = vld [vmem:[%s4] sm:$0xff]
        %v367 = vld [vmem:[%s4 + $0x8] sm:$0xff]
        %v368 = vld [vmem:[%s4 + $0x10] sm:$0xff]
        %v369 = vld [vmem:[%s4 + $0x18] sm:$0xff]
        %v370 = vld [vmem:[%s5] sm:$0xff]
        %v371 = vld [vmem:[%s5 + $0x8] sm:$0xff]
        %v372 = vld [vmem:[%s5 + $0x10] sm:$0xff]
        %v373 = vld [vmem:[%s5 + $0x18] sm:$0xff]
        %s374 = sld [smem:[#allocation2]]
        %v375 = vld [vmem:[%s350] sm:$0xff]
        %v376 = vld [vmem:[%s350 + $0x8] sm:$0xff]
        %v377 = vld [vmem:[%s350 + $0x10] sm:$0xff]
        %v378 = vld [vmem:[%s350 + $0x18] sm:$0xff]
        %v379 = vld [vmem:[%s350 + $0x20] sm:$0xff]
        %v380 = vld [vmem:[%s350 + $0x28] sm:$0xff]
        %v381 = vld [vmem:[%s350 + $0x30] sm:$0xff]
        %v382 = vld [vmem:[%s350 + $0x38] sm:$0xff]
        %v383 = vld [vmem:[%s302] sm:$0xff]
        %v384 = vld [vmem:[%s302 + $0x8] sm:$0xff]
        %v385 = vld [vmem:[%s302 + $0x10] sm:$0xff]
        %v386 = vld [vmem:[%s302 + $0x18] sm:$0xff]
        %v387 = vld [vmem:[%s302 + $0x20] sm:$0xff]
        %v388 = vld [vmem:[%s302 + $0x28] sm:$0xff]
        %v389 = vld [vmem:[%s302 + $0x30] sm:$0xff]
        %v390 = vld [vmem:[%s302 + $0x38] sm:$0xff]
        %vm391 = vcmask 261120
        %v393 = vsel %vm391, %v354, 0
        %v396 = vsel %vm391, %v355, 0
        %v399 = vsel %vm391, %v356, 0
        %v402 = vsel %vm391, %v357, 0
        %v405 = vsel %vm391, %v358, 0
        %v408 = vsel %vm391, %v359, 0
        %v411 = vsel %vm391, %v360, 0
        %v414 = vsel %vm391, %v361, 0
        %416 = vmatprep.subr.mxu0 %v384
        %417 = vmatpush1.msra.mxu0 %v383
        %418 = vmatprep.subr.mxu0 %v386
        %419 = vmatpush1.msra.mxu0 %v385
        %420 = vmatprep.subr.mxu0 %v388
        %421 = vmatpush1.msra.mxu0 %v387
        %422 = vmatprep.subr.mxu0 %v390
        %423 = vmatpush1.msra.mxu0 %v389
        %424 = vmatprep.subr.mxu0 0.0
        %425 = vmatpush1.msra.mxu0 0.0
        %426 = vmatprep.subr.mxu0 0.0
        %427 = vmatpush1.msra.mxu0 0.0
        %428 = vmatprep.subr.mxu0 0.0
        %429 = vmatpush1.msra.mxu0 0.0
        %430 = vmatprep.subr.mxu0 0.0
        %431 = vmatpush1.msra.mxu0 0.0
        %432 = vmatprep.subr.mxu0 0.0
        %433 = vmatpush1.msra.mxu0 0.0
        %434 = vmatprep.subr.mxu0 0.0
        %435 = vmatpush1.msra.mxu0 0.0
        %436 = vmatprep.subr.mxu0 0.0
        %437 = vmatpush1.msra.mxu0 0.0
        %438 = vmatprep.subr.mxu0 0.0
        %439 = vmatpush1.msra.mxu0 0.0
        %440 = vmatprep.subr.mxu0 0.0
        %441 = vmatpush1.msra.mxu0 0.0
        %442 = vmatprep.subr.mxu0 0.0
        %443 = vmatpush1.msra.mxu0 0.0
        %444 = vmatprep.subr.mxu0 0.0
        %445 = vmatpush1.msra.mxu0 0.0
        %446 = vmatprep.subr.mxu0 0.0
        %447 = vmatpush1.msra.mxu0 0.0
        %448 = vmatprep.subr.mxu0 0.0
        %449 = vmatpush1.msra.mxu0 0.0
        %450 = vmatprep.subr.mxu0 0.0
        %451 = vmatpush1.msra.mxu0 0.0
        %452 = vmatprep.subr.mxu0 0.0
        %453 = vmatpush1.msra.mxu0 0.0
        %454 = vmatprep.subr.mxu0 0.0
        %455 = vmatpush1.msra.mxu0 0.0
        %456 = vmatprep.subr.mxu0 0.0
        %457 = vmatpush1.msra.mxu0 0.0
        %458 = vmatprep.subr.mxu0 0.0
        %459 = vmatpush1.msra.mxu0 0.0
        %460 = vmatprep.subr.mxu0 0.0
        %461 = vmatpush1.msra.mxu0 0.0
        %462 = vmatprep.subr.mxu0 0.0
        %463 = vmatpush1.msra.mxu0 0.0
        %464 = vmatprep.subr.mxu0 0.0
        %465 = vmatpush1.msra.mxu0 0.0
        %466 = vmatprep.subr.mxu0 0.0
        %467 = vmatpush1.msra.mxu0 0.0
        %468 = vmatprep.subr.mxu0 0.0
        %469 = vmatpush1.msra.mxu0 0.0
        %470 = vmatprep.subr.mxu0 0.0
        %471 = vmatpush1.msra.mxu0 0.0
        %472 = vmatprep.subr.mxu0 0.0
        %473 = vmatpush1.msra.mxu0 0.0
        %474 = vmatprep.subr.mxu0 0.0
        %475 = vmatpush1.msra.mxu0 0.0
        %476 = vmatprep.subr.mxu0 0.0
        %477 = vmatpush1.msra.mxu0 0.0
        %478 = vmatprep.subr.mxu0 0.0
        %479 = vmatpush1.msra.mxu0 0.0
        %480 = vmatprep.mubr.f32.mxu0 0.0
        %481 = vmatmul.mubr.f32.gmra.mrb[0].mxu0 %v393
        %v482 = vpop.f32.mrb[0].mxu0
        %v483 = vadd.f32 0.0, %v482
        %v484 = vpop.f32.mrb[0].mxu0
        %v485 = vadd.f32 0.0, %v484
        %486 = vmatprep.mubr.f32.mxu0 0.0
        %487 = vmatmul.mubr.f32.gmra.mrb[0].mxu0 %v396
        %v488 = vpop.f32.mrb[0].mxu0
        %v489 = vadd.f32 0.0, %v488
        %v490 = vpop.f32.mrb[0].mxu0
        %v491 = vadd.f32 0.0, %v490
        %492 = vmatprep.mubr.f32.mxu0 0.0
        %493 = vmatmul.mubr.f32.gmra.mrb[0].mxu0 %v399
        %v494 = vpop.f32.mrb[0].mxu0
        %v495 = vadd.f32 0.0, %v494
        %v496 = vpop.f32.mrb[0].mxu0
        %v497 = vadd.f32 0.0, %v496
        %498 = vmatprep.mubr.f32.mxu0 0.0
        %499 = vmatmul.mubr.f32.gmra.mrb[0].mxu0 %v402
        %v500 = vpop.f32.mrb[0].mxu0
        %v501 = vadd.f32 0.0, %v500
        %v502 = vpop.f32.mrb[0].mxu0
        %v503 = vadd.f32 0.0, %v502
        %504 = vmatprep.mubr.f32.mxu0 0.0
        %505 = vmatmul.mubr.f32.gmra.mrb[0].mxu0 %v405
        %v506 = vpop.f32.mrb[0].mxu0
        %v507 = vadd.f32 0.0, %v506
        %v508 = vpop.f32.mrb[0].mxu0
        %v509 = vadd.f32 0.0, %v508
        %510 = vmatprep.mubr.f32.mxu0 0.0
        %511 = vmatmul.mubr.f32.gmra.mrb[0].mxu0 %v408
        %v512 = vpop.f32.mrb[0].mxu0
        %v513 = vadd.f32 0.0, %v512
        %v514 = vpop.f32.mrb[0].mxu0
        %v515 = vadd.f32 0.0, %v514
        %516 = vmatprep.mubr.f32.mxu0 0.0
        %517 = vmatmul.mubr.f32.gmra.mrb[0].mxu0 %v411
        %v518 = vpop.f32.mrb[0].mxu0
        %v519 = vadd.f32 0.0, %v518
        %v520 = vpop.f32.mrb[0].mxu0
        %v521 = vadd.f32 0.0, %v520
        %522 = vmatprep.mubr.f32.mxu0 0.0
        %523 = vmatmul.mubr.f32.gmra.mrb[0].mxu0 %v414
        %v524 = vpop.f32.mrb[0].mxu0
        %v525 = vadd.f32 0.0, %v524
        %v526 = vpop.f32.mrb[0].mxu0
        %v527 = vadd.f32 0.0, %v526
        %528 = vdwg.mxu0
        %530 = vset.pattern.permute.xlu0 0
        %531 = vperm.xlu0 %530, %v370
        %v532 = vpop.permute.xlu0 %531
        %535 = vset.pattern.permute.xlu0 0
        %536 = vperm.xlu0 %535, %v371
        %v537 = vpop.permute.xlu0 %536
        %540 = vset.pattern.permute.xlu0 0
        %541 = vperm.xlu0 %540, %v372
        %v542 = vpop.permute.xlu0 %541
        %545 = vset.pattern.permute.xlu0 0
        %546 = vperm.xlu0 %545, %v373
        %v547 = vpop.permute.xlu0 %546
        %v549 = vadd.f32 %v507, %v532
        %v550 = vadd.f32 %v509, %v532
        %v551 = vadd.f32 %v513, %v537
        %v552 = vadd.f32 %v515, %v537
        %v553 = vadd.f32 %v519, %v542
        %v554 = vadd.f32 %v521, %v542
        %v555 = vadd.f32 %v525, %v547
        %v556 = vadd.f32 %v527, %v547
        %558 = vset.pattern.permute.xlu0 0
        %559 = vperm.xlu0 %558, %v362
        %v560 = vpop.permute.xlu0 %559
        %563 = vset.pattern.permute.xlu0 0
        %564 = vperm.xlu0 %563, %v363
        %v565 = vpop.permute.xlu0 %564
        %568 = vset.pattern.permute.xlu0 0
        %569 = vperm.xlu0 %568, %v364
        %v570 = vpop.permute.xlu0 %569
        %573 = vset.pattern.permute.xlu0 0
        %574 = vperm.xlu0 %573, %v365
        %v575 = vpop.permute.xlu0 %574
        %v577 = vadd.f32 %v483, %v560
        %v578 = vadd.f32 %v485, %v560
        %v579 = vadd.f32 %v489, %v565
        %v580 = vadd.f32 %v491, %v565
        %v581 = vadd.f32 %v495, %v570
        %v582 = vadd.f32 %v497, %v570
        %v583 = vadd.f32 %v501, %v575
        %v584 = vadd.f32 %v503, %v575
        %v585 = vmul.f32 %v375, %v577
        %v586 = vmul.f32 %v376, %v578
        %v587 = vmul.f32 %v377, %v579
        %v588 = vmul.f32 %v378, %v580
        %v589 = vmul.f32 %v379, %v581
        %v590 = vmul.f32 %v380, %v582
        %v591 = vmul.f32 %v381, %v583
        %v592 = vmul.f32 %v382, %v584
        %594 = vset.pattern.permute.xlu0 0
        %595 = vperm.xlu0 %594, %v366
        %v596 = vpop.permute.xlu0 %595
        %599 = vset.pattern.permute.xlu0 0
        %600 = vperm.xlu0 %599, %v367
        %v601 = vpop.permute.xlu0 %600
        %604 = vset.pattern.permute.xlu0 0
        %605 = vperm.xlu0 %604, %v368
        %v606 = vpop.permute.xlu0 %605
        %609 = vset.pattern.permute.xlu0 0
        %610 = vperm.xlu0 %609, %v369
        %v611 = vpop.permute.xlu0 %610
        %v613 = vmul.f32 %v596, %v383
        %v614 = vmul.f32 %v596, %v384
        %v615 = vmul.f32 %v601, %v385
        %v616 = vmul.f32 %v601, %v386
        %v617 = vmul.f32 %v606, %v387
        %v618 = vmul.f32 %v606, %v388
        %v619 = vmul.f32 %v611, %v389
        %v620 = vmul.f32 %v611, %v390
        %v621 = vadd.f32 %v585, %v613
        %v622 = vadd.f32 %v586, %v614
        %v623 = vadd.f32 %v587, %v615
        %v624 = vadd.f32 %v588, %v616
        %v625 = vadd.f32 %v589, %v617
        %v626 = vadd.f32 %v590, %v618
        %v627 = vadd.f32 %v591, %v619
        %v628 = vadd.f32 %v592, %v620
        %v629 = vadd.f32 %v621, %v623
        %v630 = vadd.f32 %v629, %v625
        %v631 = vadd.f32 %v630, %v627
        %v632 = vrot.slane %v631, 4
        %v633 = vadd.f32 %v631, %v632
        %v634 = vrot.slane %v633, 2
        %v635 = vadd.f32 %v633, %v634
        %v636 = vrot.slane %v635, 1
        %v637 = vadd.f32 %v635, %v636
        %v638 = vadd.f32 %v622, %v624
        %v639 = vadd.f32 %v638, %v626
        %v640 = vadd.f32 %v639, %v628
        %v641 = vrot.slane %v640, 4
        %v642 = vadd.f32 %v640, %v641
        %v643 = vrot.slane %v642, 2
        %v644 = vadd.f32 %v642, %v643
        %v645 = vrot.slane %v644, 1
        %v646 = vadd.f32 %v644, %v645
        %v647 = vstv %s374
        %v648 = vadd.f32 %v637, %v647
        %v649 = vadd.f32 %v646, %v647
        %v650 = vxor.u32 %v648, 2147483648
        %v651 = vxor.u32 %v649, 2147483648
        %v652 = vmul.f32 %v650, 1.442695
        %v653 = vpow.pop %v652
        %v654 = vmul.f32 %v651, 1.442695
        %v655 = vpow.pop %v654
        %v656 = vadd.f32 %v653, 1.0
        %v657 = vadd.f32 %v655, 1.0
        %v658 = vrcp.pop %v656
        %v659 = vmul.f32 1.0, %v658
        %v660 = vrcp.pop %v657
        %v661 = vmul.f32 1.0, %v660
        %v662 = vmul.f32 %v549, %v659
        %v663 = vmul.f32 %v550, %v661
        %v664 = vmul.f32 %v551, %v659
        %v665 = vmul.f32 %v552, %v661
        %v666 = vmul.f32 %v553, %v659
        %v667 = vmul.f32 %v554, %v661
        %v668 = vmul.f32 %v555, %v659
        %v669 = vmul.f32 %v556, %v661
        %670 = vst [vmem:[%s341] sm:$0xff] %v662
        %671 = vst [vmem:[%s341 + $0x8] sm:$0xff] %v663
        %672 = vst [vmem:[%s341 + $0x10] sm:$0xff] %v664
        %673 = vst [vmem:[%s341 + $0x18] sm:$0xff] %v665
        %674 = vst [vmem:[%s341 + $0x20] sm:$0xff] %v666
        %675 = vst [vmem:[%s341 + $0x28] sm:$0xff] %v667
        %676 = vst [vmem:[%s341 + $0x30] sm:$0xff] %v668
        %677 = vst [vmem:[%s341 + $0x38] sm:$0xff] %v669
        %s678 = sand.u32 %s208, 1
        %s679 = scalar_lea.sflag [#allocation5], %s678
        %s680 = sand.u32 %s208, 1
        %s681 = smul.addr %s680, 64
        %s682 = scalar_lea.vmem [#allocation6], %s681
        // Predicated region
        $region53: #{tpu_custom_call.1} parent=47 // pred_check
          %p683 = pneg %p218
        $region54: #{tpu_custom_call.1} parent=47 // pred_check_branch
          %685 = sbr.rel (%p683) target = $region56
        $region55: #{tpu_custom_call.1} parent=47 // pred_region
          %s686 = smul.u32 2, %s30
          %s688 = ssub.s32 1024, 1024
          %689 = vsyncadd %s679, %s688
          %s690 = smul.addr %s29, 8
          %s691 = sadd.s32 %s686, %s690
          %s692 = smul.addr %s691, 128
          %s693 = scalar_lea.hbm %s7, %s692
          %s694 = sshll.u32 %s682, 4
          %s695 = int_to_ptr.vmem [resolvable:$true] %s694
          %700 = dma.vmem_to_hbm [thread:$0]  %s695, 1024, %s693, %s679, 256, 256, 16
        $region56: #{tpu_custom_call.1} parent=47 // pred_fallthru
          _
      $region48: #{tpu_custom_call.1} parent=5 // pred_fallthru
        _
      %p701 = scmp.le.s32.totalorder 2, %s20
      // Predicated region
      $region57: #{tpu_custom_call.1} parent=5 // pred_check
        %p702 = pneg %p701
      $region58: #{tpu_custom_call.1} parent=5 // pred_check_branch
        %704 = sbr.rel (%p702) target = $region60
      $region59: #{tpu_custom_call.1} parent=5 // pred_region
        %s705 = ssub.s32 %s20, 2
        // Predicated region
        $region61: #{tpu_custom_call.1} parent=59 // pred_check
          %p706 = pneg %p224
        $region62: #{tpu_custom_call.1} parent=59 // pred_check_branch
          %708 = sbr.rel (%p706) target = $region64
        $region63: #{tpu_custom_call.1} parent=59 // pred_region
          %s709 = sand.u32 %s209, 1
          %s710 = scalar_lea.sflag [#allocation5], %s709
          %s711 = sand.u32 %s209, 1
          %s712 = smul.addr %s711, 64
          %s713 = scalar_lea.vmem [#allocation6], %s712
          %714 = dma.done %s710, 1024
        $region64: #{tpu_custom_call.1} parent=59 // pred_fallthru
          _
      $region60: #{tpu_custom_call.1} parent=5 // pred_fallthru
        _
    $region6: #{tpu_custom_call.1} parent=1 // loop_footer
      %s24 = sadd.s32 1, %s20
    $region7: #{tpu_custom_call.1} parent=1 // loop_footer_branch
      %19 = sbr.rel target = $region3
    $region8: #{tpu_custom_call.1} parent=1 // loop_exit
      _
    %715 = vsyncpa [#allocation4], 1
    %s716 = scalar_lea.sflag [#allocation4], 1
    %717 = vsyncpa %s716, 1
    %718 = vsyncpa [#allocation5], 1
    %s719 = scalar_lea.sflag [#allocation5], 1
    %720 = vsyncpa %s719, 1

</llo_original>
